<compile_context>
chip_gen: v7x
topology: tpu7x:2x2x1
jax: 0.10.0
libtpu: 0.0.40
codegen_flags: <defaults>
</compile_context>

<pallas_src>
import jax
import jax.numpy as jnp
from jax import lax
from jax.experimental import pallas as pl
from jax.experimental.pallas import tpu as pltpu

EPS = 1e-5                               # default eps of LayerNorm & BatchNorm2d
_VMEM_LIMIT_BYTES = 32 * 1024 * 1024     # safe scoped-VMEM limit on v5e/v6e/v7x
_TARGET_BLOCK_BYTES = 2 * 1024 * 1024    # ~2 MiB f32 working blocks
_MAX_TILE_M = 8192


def _round_up(x, m):
    return (x + m - 1) // m * m


def _choose_tile_m(m_rows, c, sub):
    """Row-tile size targeting ~2 MiB f32 blocks, multiple of `sub` sublanes."""
    if m_rows <= sub:
        return m_rows                     # full-extent block is always legal
    t = max(_TARGET_BLOCK_BYTES // (c * 4), sub)
    t = min(t, _MAX_TILE_M)
    t = max((t // sub) * sub, sub)
    t = min(t, _round_up(m_rows, sub))
    return t


def ptnorm_lamda(warm, cur_iter, total_step, r0=1.0):
    """Replicates PTNorm's training-time blending coefficient."""
    if warm > 0:
        return 1.0
    if total_step == 0:
        return 0.0
    return r0 * float(cur_iter) / float(total_step)


# ---------------------------------------------------------------------------
# Pass 1: per-channel (per-lane) sum / sum-of-squares with scratch accumulator.
# ---------------------------------------------------------------------------
def _make_stats_kernel(tile_m, c, m_rows, has_tail):
    fold = (tile_m % 8 == 0)
    acc_rows = 8 if fold else 1

    def kernel(x_ref, sum_ref, sumsq_ref, acc_s_ref, acc_q_ref):
        i = pl.program_id(0)

        @pl.when(i == 0)
        def _():
            acc_s_ref[...] = jnp.zeros_like(acc_s_ref)
            acc_q_ref[...] = jnp.zeros_like(acc_q_ref)

        x = x_ref[...].astype(jnp.float32)
        if has_tail:
            # Last block is ragged: OOB rows hold stale VMEM -> zero them so
            # they do not perturb the sums (M is the true divisor later).
            rows_left = m_rows - i * tile_m
            row_ids = lax.broadcasted_iota(jnp.int32, x.shape, 0)
            x = jnp.where(row_ids < rows_left, x, 0.0)

        if fold:
            xr = x.reshape(tile_m // 8, 8, c)       # vreg-aligned split, free
            acc_s_ref[...] += jnp.sum(xr, axis=0)   # pure VPU adds
            acc_q_ref[...] += jnp.sum(xr * xr, axis=0)
        else:
            acc_s_ref[...] += jnp.sum(x, axis=0, keepdims=True)
            acc_q_ref[...] += jnp.sum(x * x, axis=0, keepdims=True)

        @pl.when(i == pl.num_programs(0) - 1)
        def _():
            sum_ref[...] = jnp.sum(acc_s_ref[...], axis=0, keepdims=True)
            sumsq_ref[...] = jnp.sum(acc_q_ref[...], axis=0, keepdims=True)

    scratch = [pltpu.VMEM((acc_rows, c), jnp.float32),
               pltpu.VMEM((acc_rows, c), jnp.float32)]
    return kernel, scratch


# ---------------------------------------------------------------------------
# Pass 2 variants: y = lg * LayerNorm_hat(x) + s * x + bb   (affine pre-folded)
# ---------------------------------------------------------------------------
def _apply_ln_bn_kernel(x_ref, lg_ref, s_ref, bb_ref, o_ref):
    """Unpacked layout: LN statistics over the full lane axis."""
    x = x_ref[...].astype(jnp.float32)
    mu = jnp.mean(x, axis=-1, keepdims=True)
    ex2 = jnp.mean(x * x, axis=-1, keepdims=True)
    var = ex2 - mu * mu
    rstd = lax.rsqrt(var + EPS)
    y = (x - mu) * rstd * lg_ref[...] + x * s_ref[...] + bb_ref[...]
    o_ref[...] = y.astype(o_ref.dtype)


def _apply_ln_bn_packed_kernel(x_ref, lg_ref, s_ref, bb_ref, seg_ref, o_ref):
    """Lane-packed layout: per-segment LN means via block-diagonal MXU matmul."""
    x = x_ref[...].astype(jnp.float32)
    seg = seg_ref[...]                     # (C, C) block-diagonal, entries 1/D
    mu = jnp.dot(x, seg, preferred_element_type=jnp.float32,
                 precision=lax.Precision.HIGHEST)
    ex2 = jnp.dot(x * x, seg, preferred_element_type=jnp.float32,
                  precision=lax.Precision.HIGHEST)
    var = ex2 - mu * mu
    rstd = lax.rsqrt(var + EPS)
    y = (x - mu) * rstd * lg_ref[...] + x * s_ref[...] + bb_ref[...]
    o_ref[...] = y.astype(o_ref.dtype)


def _apply_bn_only_kernel(x_ref, s_ref, bb_ref, o_ref):
    """lamda == 0: no LayerNorm work at all."""
    x = x_ref[...].astype(jnp.float32)
    o_ref[...] = (x * s_ref[...] + bb_ref[...]).astype(o_ref.dtype)


# ---------------------------------------------------------------------------
# Wrapper
# ---------------------------------------------------------------------------
def ptnorm_forward(x, ln_gamma, ln_beta, bn_gamma, bn_beta, lamda):
    """PTNorm training forward: lamda*LN(x) + (1-lamda)*BN(x). x: (T,B,L,D)."""
    T, B, L, D = x.shape
    M = T * B * L

    # Lane-dense packing for small D (restores full 128-lane vreg utilization).
    if D < 128 and 128 % D == 0 and M % (128 // D) == 0:
        k = 128 // D
    else:
        k = 1
    C = k * D
    m_rows = M // k
    xf = x.reshape(m_rows, C)              # free row-major view

    itemsize = jnp.dtype(x.dtype).itemsize
    sub = {4: 8, 2: 16, 1: 32}.get(itemsize, 8)
    tile_m = _choose_tile_m(m_rows, C, sub)
    n_tiles = pl.cdiv(m_rows, tile_m)
    has_tail = (m_rows % tile_m) != 0

    is_static = isinstance(lamda, (int, float))
    bn_needed = (not is_static) or float(lamda) != 1.0
    ln_needed = (not is_static) or float(lamda) != 0.0
    lam = jnp.asarray(lamda, jnp.float32)

    ln_g = ln_gamma.reshape(1, D).astype(jnp.float32)
    ln_b = ln_beta.reshape(1, D).astype(jnp.float32)
    bn_g = bn_gamma.reshape(1, D).astype(jnp.float32)
    bn_b = bn_beta.reshape(1, D).astype(jnp.float32)

    # ---- Pass 1: per-channel reduction (skipped entirely during warm-up) ----
    if bn_needed:
        stats_kernel, stats_scratch = _make_stats_kernel(tile_m, C, m_rows, has_tail)
        psum, psumsq = pl.pallas_call(
            stats_kernel,
            out_shape=(jax.ShapeDtypeStruct((1, C), jnp.float32),
                       jax.ShapeDtypeStruct((1, C), jnp.float32)),
            grid=(n_tiles,),
            in_specs=[pl.BlockSpec((tile_m, C), lambda i: (i, 0))],
            out_specs=(pl.BlockSpec((1, C), lambda i: (0, 0)),
                       pl.BlockSpec((1, C), lambda i: (0, 0))),
            scratch_shapes=stats_scratch,
            compiler_params=pltpu.CompilerParams(
                dimension_semantics=("arbitrary",),
                vmem_limit_bytes=_VMEM_LIMIT_BYTES),
            cost_estimate=pl.CostEstimate(
                flops=3 * M * D, transcendentals=0,
                bytes_accessed=M * D * itemsize + 2 * C * 4),
        )(xf)

        # Fold the k interleaved channel groups back to true per-channel sums.
        sums = psum.reshape(k, D).sum(axis=0, keepdims=True)
        sumsqs = psumsq.reshape(k, D).sum(axis=0, keepdims=True)
        mean = sums / M                     # true M (tail rows masked to zero)
        var = sumsqs / M - mean * mean      # biased variance (BN training norm)
        invstd = lax.rsqrt(var + EPS)
        bn_scale = bn_g * invstd
        bn_bias = bn_b - mean * bn_scale
    else:
        bn_scale = jnp.zeros((1, D), jnp.float32)
        bn_bias = jnp.zeros((1, D), jnp.float32)

    # ---- Tiny (1, D) glue math: fold everything into 3 vectors --------------
    lg = lam * ln_g                                 # scales LayerNorm-hat
    s = (1.0 - lam) * bn_scale                      # scales raw x (BN part)
    bb = lam * ln_b + (1.0 - lam) * bn_bias         # combined bias
    if k > 1:                                       # tile across packed groups
        lg = jnp.tile(lg, (1, k))
        s = jnp.tile(s, (1, k))
        bb = jnp.tile(bb, (1, k))

    x_spec = pl.BlockSpec((tile_m, C), lambda i: (i, 0))
    vec_spec = pl.BlockSpec((1, C), lambda i: (0, 0))
    out_spec = pl.BlockSpec((tile_m, C), lambda i: (i, 0))
    cparams = pltpu.CompilerParams(
        dimension_semantics=("parallel",),
        vmem_limit_bytes=_VMEM_LIMIT_BYTES)
    bytes2 = 2 * M * D * itemsize + 3 * C * 4
    cost2 = pl.CostEstimate(flops=10 * M * D, transcendentals=M,
                            bytes_accessed=bytes2)

    # ---- Pass 2: fused elementwise apply (no padding, no output slice) ------
    if not ln_needed:
        yf = pl.pallas_call(
            _apply_bn_only_kernel,
            out_shape=jax.ShapeDtypeStruct((m_rows, C), x.dtype),
            grid=(n_tiles,),
            in_specs=[x_spec, vec_spec, vec_spec],
            out_specs=out_spec,
            compiler_params=cparams,
            cost_estimate=cost2,
        )(xf, s, bb)
    elif k > 1:
        group = jnp.arange(C, dtype=jnp.int32) // D
        seg = (group[:, None] == group[None, :]).astype(jnp.float32) * (1.0 / D)
        yf = pl.pallas_call(
            _apply_ln_bn_packed_kernel,
            out_shape=jax.ShapeDtypeStruct((m_rows, C), x.dtype),
            grid=(n_tiles,),
            in_specs=[x_spec, vec_spec, vec_spec, vec_spec,
                      pl.BlockSpec((C, C), lambda i: (0, 0))],
            out_specs=out_spec,
            compiler_params=cparams,
            cost_estimate=cost2,
        )(xf, lg, s, bb, seg)
    else:
        yf = pl.pallas_call(
            _apply_ln_bn_kernel,
            out_shape=jax.ShapeDtypeStruct((m_rows, C), x.dtype),
            grid=(n_tiles,),
            in_specs=[x_spec, vec_spec, vec_spec, vec_spec],
            out_specs=out_spec,
            compiler_params=cparams,
            cost_estimate=cost2,
        )(xf, lg, s, bb)

    return yf.reshape(T, B, L, D)


def norm_forward(x, ln_gamma, ln_beta, bn_gamma, bn_beta,
                 warm=0, cur_iter=0, total_step=0, r0=1.0):
    """Norm(norm_type=3) training forward."""
    lamda = ptnorm_lamda(warm, cur_iter, total_step, r0)
    return ptnorm_forward(x, ln_gamma, ln_beta, bn_gamma, bn_beta, lamda)


# ---------------------------------------------------------------------------
# Self-test
# ---------------------------------------------------------------------------
def _reference(x, ln_gamma, ln_beta, bn_gamma, bn_beta, lamda):
    mu = jnp.mean(x, axis=-1, keepdims=True)
    v_ln = jnp.mean((x - mu) ** 2, axis=-1, keepdims=True)
    ln_ref = (x - mu) / jnp.sqrt(v_ln + EPS) * ln_gamma + ln_beta
    m_bn = jnp.mean(x, axis=(0, 1, 2), keepdims=True)
    v_bn = jnp.mean((x - m_bn) ** 2, axis=(0, 1, 2), keepdims=True)
    bn_ref = (x - m_bn) / jnp.sqrt(v_bn + EPS) * bn_gamma + bn_beta
    return lamda * ln_ref + (1.0 - lamda) * bn_ref


if __name__ == "__main__":
    key = jax.random.PRNGKey(0)

    def _make_params(keys, d):
        k2, k3, k4, k5 = keys
        ln_gamma = 1.0 + 0.1 * jax.random.normal(k2, (d,), dtype=jnp.float32)
        ln_beta = 0.1 * jax.random.normal(k3, (d,), dtype=jnp.float32)
        bn_gamma = 1.0 + 0.1 * jax.random.normal(k4, (d,), dtype=jnp.float32)
        bn_beta = 0.1 * jax.random.normal(k5, (d,), dtype=jnp.float32)
        return ln_gamma, ln_beta, bn_gamma, bn_beta

    # --- Main case: [T, B, L, D] = [8, 2, 16, 32], mid-training (lamda=0.6) ---
    T, B, L, D = 8, 2, 16, 32
    k1, k2, k3, k4, k5 = jax.random.split(key, 5)
    x = jax.random.normal(k1, (T, B, L, D), dtype=jnp.float32)
    ln_gamma, ln_beta, bn_gamma, bn_beta = _make_params((k2, k3, k4, k5), D)

    warm, cur_iter, total_step, r0 = 0, 6, 10, 1.0
    lamda = ptnorm_lamda(warm, cur_iter, total_step, r0)   # = 0.6
    y = jax.block_until_ready(
        norm_forward(x, ln_gamma, ln_beta, bn_gamma, bn_beta,
                     warm=warm, cur_iter=cur_iter, total_step=total_step, r0=r0))
    ref = _reference(x, ln_gamma, ln_beta, bn_gamma, bn_beta, lamda)
    assert y.shape == x.shape and y.dtype == x.dtype
    assert jnp.allclose(y, ref, atol=5e-3, rtol=5e-3), "mismatch (lamda=0.6)"

    # --- Warm-up case: lamda == 1.0 -> stats pass skipped ---------------------
    y1 = jax.block_until_ready(
        ptnorm_forward(x, ln_gamma, ln_beta, bn_gamma, bn_beta, 1.0))
    ref1 = _reference(x, ln_gamma, ln_beta, bn_gamma, bn_beta, 1.0)
    assert jnp.allclose(y1, ref1, atol=5e-3, rtol=5e-3), "mismatch (lamda=1.0)"

    # --- BN-only case: lamda == 0.0 -> no LN work in the apply kernel --------
    y0 = jax.block_until_ready(
        ptnorm_forward(x, ln_gamma, ln_beta, bn_gamma, bn_beta, 0.0))
    ref0 = _reference(x, ln_gamma, ln_beta, bn_gamma, bn_beta, 0.0)
    assert jnp.allclose(y0, ref0, atol=5e-3, rtol=5e-3), "mismatch (lamda=0.0)"

    # --- Unpacked path (D = 128, lane-dense already) --------------------------
    T2, B2, L2, D2 = 2, 2, 4, 128
    j1, j2, j3, j4, j5 = jax.random.split(jax.random.PRNGKey(1), 5)
    x2 = jax.random.normal(j1, (T2, B2, L2, D2), dtype=jnp.float32)
    p2 = _make_params((j2, j3, j4, j5), D2)
    y2 = jax.block_until_ready(ptnorm_forward(x2, *p2, 0.5))
    ref2 = _reference(x2, *p2, 0.5)
    assert jnp.allclose(y2, ref2, atol=5e-3, rtol=5e-3), "mismatch (D=128)"

    print("KERNEL_OK")
</pallas_src>

<mosaic_0001>
module attributes {stable_mosaic.version = 11 : i64} {
  func.func @kernel(%arg0: i32, %arg1: memref<64x128xf32, #tpu.memory_space<vmem>>, %arg2: memref<1x128xf32, #tpu.memory_space<vmem>>, %arg3: memref<1x128xf32, #tpu.memory_space<vmem>>, %arg4: memref<8x128xf32, #tpu.memory_space<vmem>>, %arg5: memref<8x128xf32, #tpu.memory_space<vmem>>) attributes {dimension_semantics = [#tpu.dimension_semantics<arbitrary>], iteration_bounds = array<i64: 1>, scalar_prefetch = 0 : i64, scratch_operands = 2 : i64, tpu.core_type = #tpu.core_type<tc>, window_params = [{transform_indices = @transform_0, window_bounds = array<i64: 64, 128>}, {pipeline_mode = #tpu.pipeline_mode<synchronous>, transform_indices = @transform_1, window_bounds = array<i64: 1, 128>}, {pipeline_mode = #tpu.pipeline_mode<synchronous>, transform_indices = @transform_2, window_bounds = array<i64: 1, 128>}]} {
    %c0_i32 = arith.constant 0 : i32
    %0 = arith.cmpi eq, %arg0, %c0_i32 : i32
    %1 = arith.extui %0 : i1 to i32
    %c0_i32_0 = arith.constant 0 : i32
    %2 = arith.cmpi ne, %1, %c0_i32_0 : i32
    scf.if %2 {
      %cst_13 = arith.constant 0.000000e+00 : f32
      %17 = vector.broadcast %cst_13 : f32 to vector<8x128xf32>
      %c0_14 = arith.constant 0 : index
      %c0_15 = arith.constant 0 : index
      %18 = vector.load %arg4[%c0_14, %c0_15] : memref<8x128xf32, #tpu.memory_space<vmem>>, vector<8x128xf32>
      tpu.vector_store %arg4[%c0_14, %c0_15], %17 {strides = array<i32>} : memref<8x128xf32, #tpu.memory_space<vmem>>, vector<8x128xf32>,
      %cst_16 = arith.constant 0.000000e+00 : f32
      %19 = vector.broadcast %cst_16 : f32 to vector<8x128xf32>
      %c0_17 = arith.constant 0 : index
      %c0_18 = arith.constant 0 : index
      %20 = vector.load %arg5[%c0_17, %c0_18] : memref<8x128xf32, #tpu.memory_space<vmem>>, vector<8x128xf32>
      tpu.vector_store %arg5[%c0_17, %c0_18], %19 {strides = array<i32>} : memref<8x128xf32, #tpu.memory_space<vmem>>, vector<8x128xf32>,
    } else {
    }
    %c0 = arith.constant 0 : index
    %c0_1 = arith.constant 0 : index
    %3 = vector.load %arg1[%c0, %c0_1] : memref<64x128xf32, #tpu.memory_space<vmem>>, vector<64x128xf32>
    %4 = vector.shape_cast %3 : vector<64x128xf32> to vector<8x8x128xf32>
    %c0_2 = arith.constant 0 : index
    %c0_3 = arith.constant 0 : index
    %5 = vector.load %arg4[%c0_2, %c0_3] : memref<8x128xf32, #tpu.memory_space<vmem>>, vector<8x128xf32>
    %cst = arith.constant dense<0.000000e+00> : vector<8x128xf32>
    %6 = vector.multi_reduction <add>, %4, %cst [0] : vector<8x8x128xf32> to vector<8x128xf32>
    %7 = arith.addf %5, %6 : vector<8x128xf32>
    %c0_4 = arith.constant 0 : index
    %c0_5 = arith.constant 0 : index
    %8 = vector.load %arg4[%c0_4, %c0_5] : memref<8x128xf32, #tpu.memory_space<vmem>>, vector<8x128xf32>
    tpu.vector_store %arg4[%c0_4, %c0_5], %7 {strides = array<i32>} : memref<8x128xf32, #tpu.memory_space<vmem>>, vector<8x128xf32>,
    %c0_6 = arith.constant 0 : index
    %c0_7 = arith.constant 0 : index
    %9 = vector.load %arg5[%c0_6, %c0_7] : memref<8x128xf32, #tpu.memory_space<vmem>>, vector<8x128xf32>
    %10 = arith.mulf %4, %4 : vector<8x8x128xf32>
    %cst_8 = arith.constant dense<0.000000e+00> : vector<8x128xf32>
    %11 = vector.multi_reduction <add>, %10, %cst_8 [0] : vector<8x8x128xf32> to vector<8x128xf32>
    %12 = arith.addf %9, %11 : vector<8x128xf32>
    %c0_9 = arith.constant 0 : index
    %c0_10 = arith.constant 0 : index
    %13 = vector.load %arg5[%c0_9, %c0_10] : memref<8x128xf32, #tpu.memory_space<vmem>>, vector<8x128xf32>
    tpu.vector_store %arg5[%c0_9, %c0_10], %12 {strides = array<i32>} : memref<8x128xf32, #tpu.memory_space<vmem>>, vector<8x128xf32>,
    %c0_i32_11 = arith.constant 0 : i32
    %14 = arith.cmpi eq, %arg0, %c0_i32_11 : i32
    %15 = arith.extui %14 : i1 to i32
    %c0_i32_12 = arith.constant 0 : i32
    %16 = arith.cmpi ne, %15, %c0_i32_12 : i32
    scf.if %16 {
      %c0_13 = arith.constant 0 : index
      %c0_14 = arith.constant 0 : index
      %17 = vector.load %arg4[%c0_13, %c0_14] : memref<8x128xf32, #tpu.memory_space<vmem>>, vector<8x128xf32>
      %cst_15 = arith.constant dense<0.000000e+00> : vector<128xf32>
      %18 = vector.multi_reduction <add>, %17, %cst_15 [0] : vector<8x128xf32> to vector<128xf32>
      %19 = vector.shape_cast %18 : vector<128xf32> to vector<1x128xf32>
      %c0_16 = arith.constant 0 : index
      %c0_17 = arith.constant 0 : index
      %20 = vector.load %arg2[%c0_16, %c0_17] : memref<1x128xf32, #tpu.memory_space<vmem>>, vector<1x128xf32>
      tpu.vector_store %arg2[%c0_16, %c0_17], %19 {strides = array<i32>} : memref<1x128xf32, #tpu.memory_space<vmem>>, vector<1x128xf32>,
      %c0_18 = arith.constant 0 : index
      %c0_19 = arith.constant 0 : index
      %21 = vector.load %arg5[%c0_18, %c0_19] : memref<8x128xf32, #tpu.memory_space<vmem>>, vector<8x128xf32>
      %cst_20 = arith.constant dense<0.000000e+00> : vector<128xf32>
      %22 = vector.multi_reduction <add>, %21, %cst_20 [0] : vector<8x128xf32> to vector<128xf32>
      %23 = vector.shape_cast %22 : vector<128xf32> to vector<1x128xf32>
      %c0_21 = arith.constant 0 : index
      %c0_22 = arith.constant 0 : index
      %24 = vector.load %arg3[%c0_21, %c0_22] : memref<1x128xf32, #tpu.memory_space<vmem>>, vector<1x128xf32>
      tpu.vector_store %arg3[%c0_21, %c0_22], %23 {strides = array<i32>} : memref<1x128xf32, #tpu.memory_space<vmem>>, vector<1x128xf32>,
    } else {
    }
    return
  }
  func.func @transform_0(%arg0: i32) -> (i32, i32) {
    %c0_i32 = arith.constant 0 : i32
    %c0_i32_0 = arith.constant 0 : i32
    return %arg0, %c0_i32 : i32, i32
  }
  func.func @transform_1(%arg0: i32) -> (i32, i32) {
    %c0_i32 = arith.constant 0 : i32
    %c0_i32_0 = arith.constant 0 : i32
    %c0_i32_1 = arith.constant 0 : i32
    return %c0_i32, %c0_i32_0 : i32, i32
  }
  func.func @transform_2(%arg0: i32) -> (i32, i32) {
    %c0_i32 = arith.constant 0 : i32
    %c0_i32_0 = arith.constant 0 : i32
    %c0_i32_1 = arith.constant 0 : i32
    return %c0_i32, %c0_i32_0 : i32, i32
  }
}

</mosaic_0001>

<llo_original>
// kernel: tpu_custom_call.1
$region0: #{tpu_custom_call.1}
  #allocation0 [shape = 'u32[]', space=smem, size = 0x4, offset = 0x4, fixed_abs, tag = 'smem constant byte address 0x4 - core index']
  #allocation1 [shape = 'u32[144,128]{1,0:T(1,128)}', space=vmem, size = 0x12000, scoped, tag = 'internal scratch']
  #allocation2 [shape = 'f32[8,128]{1,0:T(8,128)}', space=vmem, size = 0x1000, scoped, tag = 'scratch operand']
  #allocation3 [shape = 'f32[8,128]{1,0:T(8,128)}', space=vmem, size = 0x1000, scoped, tag = 'scratch operand']
  %s0 = inlined_call_operand.hbm [shape: f32[64,128], index: 0, kind: input, shape index: {}]
  %s1 = inlined_call_operand.hbm [shape: f32[1,128], index: 1, kind: output, shape index: {0}]
  %s2 = inlined_call_operand.hbm [shape: f32[1,128], index: 2, kind: output, shape index: {1}]
  %3 = xla_tuple %s1, %s2
  %s4 = sld [smem:[#allocation0]]
  $region34: #{tpu_custom_call.1} parent=0
    _
  %s6 = ssub.s32 1, %s4
  %s7 = scalar_select 0, %s6, %s4
  $region1: #{tpu_custom_call.1} parent=0
    #allocation4 [shape = 'u8[32768]{0}', space=vmem, size = 0x8000, scoped, tag = 'input window, operand 0, single buffered']
    #allocation5 [shape = 's32[1]{0}', space=sflag, size = 0x4, scoped, tag = 'scoped memory for tpu_custom_call.1']
    #allocation6 [shape = 's32[1]{0}', space=sflag, size = 0x4, scoped, tag = 'scoped memory for tpu_custom_call.1']
    #allocation7 [shape = 'u8[512]{0}', space=vmem, size = 0x400, scoped, tag = 'output window, operand 0, single buffered']
    #allocation8 [shape = 'u8[512]{0}', space=vmem, size = 0x400, scoped, tag = 'output window, operand 1, single buffered']
    #allocation9 [shape = 's32[1]{0}', space=sflag, size = 0x4, scoped, tag = 'scoped memory for tpu_custom_call.1']
    %8 = vsyncpa [#allocation5], 0
    %9 = vsyncpa [#allocation6], 0
    %10 = vsyncpa [#allocation9], 0
    // Predicated region
    $region2: #{tpu_custom_call.1} parent=1 // pred_check
      _
    $region3: #{tpu_custom_call.1} parent=1 // pred_check_branch
      %12 = sbr.rel (0) target = $region5
    $region4: #{tpu_custom_call.1} parent=1 // pred_region
      %s14 = ssub.s32 1024, 1024
      %15 = vsyncadd [#allocation5], %s14
      %s16 = sshll.u32 [#allocation4], 4
      %s17 = int_to_ptr.vmem [resolvable:$true] %s16
      %22 = dma.hbm_to_vmem [thread:$0]  %s0, 1024, %s17, [#allocation5], 128, 128, 8
    $region5: #{tpu_custom_call.1} parent=1 // pred_fallthru
      _
    // Predicated region
    $region6: #{tpu_custom_call.1} parent=1 // pred_check
      _
    $region7: #{tpu_custom_call.1} parent=1 // pred_check_branch
      %24 = sbr.rel (0) target = $region9
    $region8: #{tpu_custom_call.1} parent=1 // pred_region
      %25 = dma.done [#allocation5], 1024
    $region9: #{tpu_custom_call.1} parent=1 // pred_fallthru
      _
    %p26 = scmp.eq.s32.totalorder 0, 0
    // Predicated region
    $region10: #{tpu_custom_call.1} parent=1 // pred_check
      %p27 = pneg %p26
    $region11: #{tpu_custom_call.1} parent=1 // pred_check_branch
      %29 = sbr.rel (%p27) target = $region13
    $region12: #{tpu_custom_call.1} parent=1 // pred_region
      %30 = vst [vmem:[#allocation2] sm:$0xff] 0.0
      %31 = vst [vmem:[#allocation3] sm:$0xff] 0.0
    $region13: #{tpu_custom_call.1} parent=1 // pred_fallthru
      _
    %v32 = vld [vmem:[#allocation4] sm:$0xff]
    %v33 = vld [vmem:[#allocation4 + $0x8] sm:$0xff]
    %v34 = vld [vmem:[#allocation4 + $0x10] sm:$0xff]
    %v35 = vld [vmem:[#allocation4 + $0x18] sm:$0xff]
    %v36 = vld [vmem:[#allocation4 + $0x20] sm:$0xff]
    %v37 = vld [vmem:[#allocation4 + $0x28] sm:$0xff]
    %v38 = vld [vmem:[#allocation4 + $0x30] sm:$0xff]
    %v39 = vld [vmem:[#allocation4 + $0x38] sm:$0xff]
    %v40 = vld [vmem:[#allocation2] sm:$0xff]
    %v41 = vadd.f32 %v32, %v33
    %v42 = vadd.f32 %v41, %v34
    %v43 = vadd.f32 %v42, %v35
    %v44 = vadd.f32 %v43, %v36
    %v45 = vadd.f32 %v44, %v37
    %v46 = vadd.f32 %v45, %v38
    %v47 = vadd.f32 %v46, %v39
    %v48 = vadd.f32 %v40, %v47
    %49 = vst [vmem:[#allocation2] sm:$0xff] %v48
    %v50 = vld [vmem:[#allocation3] sm:$0xff]
    %v51 = vmul.f32 %v32, %v32
    %v52 = vmul.f32 %v33, %v33
    %v53 = vmul.f32 %v34, %v34
    %v54 = vmul.f32 %v35, %v35
    %v55 = vmul.f32 %v36, %v36
    %v56 = vmul.f32 %v37, %v37
    %v57 = vmul.f32 %v38, %v38
    %v58 = vmul.f32 %v39, %v39
    %v59 = vadd.f32 %v51, %v52
    %v60 = vadd.f32 %v59, %v53
    %v61 = vadd.f32 %v60, %v54
    %v62 = vadd.f32 %v61, %v55
    %v63 = vadd.f32 %v62, %v56
    %v64 = vadd.f32 %v63, %v57
    %v65 = vadd.f32 %v64, %v58
    %v66 = vadd.f32 %v50, %v65
    %67 = vst [vmem:[#allocation3] sm:$0xff] %v66
    // Predicated region
    $region14: #{tpu_custom_call.1} parent=1 // pred_check
      %p68 = pneg %p26
    $region15: #{tpu_custom_call.1} parent=1 // pred_check_branch
      %70 = sbr.rel (%p68) target = $region17
    $region16: #{tpu_custom_call.1} parent=1 // pred_region
      %v71 = vld [vmem:[#allocation2] sm:$0xff]
      %v72 = vrot.slane %v71, 4
      %v73 = vadd.f32 %v71, %v72
      %v74 = vrot.slane %v73, 2
      %v75 = vadd.f32 %v73, %v74
      %v76 = vrot.slane %v75, 1
      %v77 = vadd.f32 %v75, %v76
      %78 = vst [vmem:[#allocation7] sm:$0x1] %v77
      %v79 = vld [vmem:[#allocation3] sm:$0xff]
      %v80 = vrot.slane %v79, 4
      %v81 = vadd.f32 %v79, %v80
      %v82 = vrot.slane %v81, 2
      %v83 = vadd.f32 %v81, %v82
      %v84 = vrot.slane %v83, 1
      %v85 = vadd.f32 %v83, %v84
      %86 = vst [vmem:[#allocation8] sm:$0x1] %v85
    $region17: #{tpu_custom_call.1} parent=1 // pred_fallthru
      _
    // Predicated region
    $region18: #{tpu_custom_call.1} parent=1 // pred_check
      _
    $region19: #{tpu_custom_call.1} parent=1 // pred_check_branch
      %88 = sbr.rel (0) target = $region21
    $region20: #{tpu_custom_call.1} parent=1 // pred_region
      %s90 = ssub.s32 16, 16
      %91 = vsyncadd [#allocation6], %s90
      %s93 = sshll.u32 [#allocation7], 4
      %s94 = int_to_ptr.vmem [resolvable:$true] %s93
      %96 = dma.vmem_to_hbm [thread:$0]  %s94, 16, %s1, [#allocation6]
    $region21: #{tpu_custom_call.1} parent=1 // pred_fallthru
      _
    // Predicated region
    $region22: #{tpu_custom_call.1} parent=1 // pred_check
      _
    $region23: #{tpu_custom_call.1} parent=1 // pred_check_branch
      %98 = sbr.rel (0) target = $region25
    $region24: #{tpu_custom_call.1} parent=1 // pred_region
      %s100 = ssub.s32 16, 16
      %101 = vsyncadd [#allocation9], %s100
      %s103 = sshll.u32 [#allocation8], 4
      %s104 = int_to_ptr.vmem [resolvable:$true] %s103
      %106 = dma.vmem_to_hbm [thread:$0]  %s104, 16, %s2, [#allocation9]
    $region25: #{tpu_custom_call.1} parent=1 // pred_fallthru
      _
    // Predicated region
    $region26: #{tpu_custom_call.1} parent=1 // pred_check
      _
    $region27: #{tpu_custom_call.1} parent=1 // pred_check_branch
      %108 = sbr.rel (0) target = $region29
    $region28: #{tpu_custom_call.1} parent=1 // pred_region
      %109 = dma.done [#allocation6], 16
    $region29: #{tpu_custom_call.1} parent=1 // pred_fallthru
      _
    // Predicated region
    $region30: #{tpu_custom_call.1} parent=1 // pred_check
      _
    $region31: #{tpu_custom_call.1} parent=1 // pred_check_branch
      %111 = sbr.rel (0) target = $region33
    $region32: #{tpu_custom_call.1} parent=1 // pred_region
      %112 = dma.done [#allocation9], 16
    $region33: #{tpu_custom_call.1} parent=1 // pred_fallthru
      _
    %113 = vsyncpa [#allocation5], 1
    %114 = vsyncpa [#allocation6], 1
    %115 = vsyncpa [#allocation9], 1

</llo_original>
